<compile_context>
chip_gen: v7x
topology: tpu7x:2x2x1
jax: 0.10.0
libtpu: 0.0.40
codegen_flags: <defaults>
</compile_context>

<pallas_src>
import jax
import jax.numpy as jnp
from jax.experimental import pallas as pl
from jax.experimental.pallas import tpu as pltpu

# ----------------------------- model dims -----------------------------------
B = 2        # batch
S = 8        # sequence length
H = 128      # hidden size
F = 256      # FFN intermediate size
VOCAB = 64
LN_EPS = 1e-12


def _layer_norm(x, g, b):
    mu = jnp.mean(x, axis=-1, keepdims=True)
    var = jnp.mean((x - mu) ** 2, axis=-1, keepdims=True)
    return (x - mu) * jax.lax.rsqrt(var + LN_EPS) * g + b


def _encoder_head_kernel(
    x_ref, bias_ref,
    wqkv_ref, bqkv_ref, wo_ref, bo_ref, ln1g_ref, ln1b_ref,
    w1_ref, b1_ref, w2_ref, b2_ref, ln2g_ref, ln2b_ref,
    wcls_ref, bcls_ref,
    out_ref,
):
    """Whole batch at once: encoder layer -> Linear(H,1) -> sigmoid."""
    x_bf = x_ref[...]                      # (T, H) bf16, T = B*S
    x = x_bf.astype(jnp.float32)

    # --- self attention (single head of width H), block-diagonal over batch ---
    qkv = jnp.dot(x_bf, wqkv_ref[...],
                  preferred_element_type=jnp.float32) + bqkv_ref[...]       # (T, 3H)
    q, k, v = qkv[:, :H], qkv[:, H:2 * H], qkv[:, 2 * H:]

    # contract hidden axes (avoids explicit transpose); add block-diag mask
    scores = jax.lax.dot_general(
        q, k, (((1,), (1,)), ((), ())), preferred_element_type=jnp.float32
    ) * (H ** -0.5) + bias_ref[...]                                         # (T, T)

    m = jnp.max(scores, axis=-1, keepdims=True)
    e = jnp.exp(scores - m)
    attn = e * pl.reciprocal(jnp.sum(e, axis=-1, keepdims=True), approx=True)

    ctx = jnp.dot(attn, v, preferred_element_type=jnp.float32)              # (T, H)
    attn_out = jnp.dot(ctx.astype(jnp.bfloat16), wo_ref[...],
                       preferred_element_type=jnp.float32) + bo_ref[...]

    h = _layer_norm(x + attn_out, ln1g_ref[...], ln1b_ref[...])

    # --- feed forward ---
    ffn = jnp.dot(h.astype(jnp.bfloat16), w1_ref[...],
                  preferred_element_type=jnp.float32) + b1_ref[...]
    ffn = jax.nn.gelu(ffn, approximate=True)
    ffn = jnp.dot(ffn.astype(jnp.bfloat16), w2_ref[...],
                  preferred_element_type=jnp.float32) + b2_ref[...]

    h = _layer_norm(h + ffn, ln2g_ref[...], ln2b_ref[...])                  # last_hidden_state

    # --- classification head Linear(H, 1) + sigmoid, stored lane-dense (1, T) ---
    logits = jax.lax.dot_general(
        wcls_ref[...], h, (((1,), (1,)), ((), ())),
        preferred_element_type=jnp.float32)                                 # (1, T)
    out_ref[...] = jax.nn.sigmoid(logits + bcls_ref[0])


def deletion_summary_forward(x_flat_bf16, attn_bias, p):
    """x_flat_bf16: [B*S, H] bf16 embeddings; attn_bias: [B*S, B*S] f32 additive mask."""
    T = x_flat_bf16.shape[0]

    def vmem():
        return pl.BlockSpec(memory_space=pltpu.MemorySpace.VMEM)

    in_specs = [vmem() for _ in range(15)] + [
        pl.BlockSpec(memory_space=pltpu.MemorySpace.SMEM)]  # scalar bcls -> SMEM

    out = pl.pallas_call(
        _encoder_head_kernel,
        out_shape=jax.ShapeDtypeStruct((1, T), jnp.float32),   # lane-dense output
        in_specs=in_specs,
        out_specs=pl.BlockSpec(memory_space=pltpu.MemorySpace.VMEM),
    )(
        x_flat_bf16, attn_bias,
        p["wqkv"], p["bqkv"], p["wo"], p["bo"], p["ln1g"], p["ln1b"],
        p["w1"], p["b1"], p["w2"], p["b2"], p["ln2g"], p["ln2b"],
        p["wcls"], p["bcls"],
    )
    return out.reshape(T // S, S, 1)                            # [B, S, 1]


# ------------------------ plain-JAX reference (batched) ----------------------
def reference_forward(x_bf16, mask_bias, p):
    def ln(x, g, b):
        mu = jnp.mean(x, axis=-1, keepdims=True)
        var = jnp.mean((x - mu) ** 2, axis=-1, keepdims=True)
        return (x - mu) * jax.lax.rsqrt(var + LN_EPS) * g + b

    x = x_bf16.astype(jnp.float32)
    qkv = jnp.einsum("bsh,hk->bsk", x_bf16, p["wqkv"],
                     preferred_element_type=jnp.float32) + p["bqkv"]
    q, k, v = qkv[..., :H], qkv[..., H:2 * H], qkv[..., 2 * H:]
    scores = jnp.einsum("bsh,bth->bst", q, k) * (H ** -0.5) + mask_bias
    attn = jax.nn.softmax(scores, axis=-1)
    ctx = jnp.einsum("bst,bth->bsh", attn, v)
    attn_out = jnp.einsum("bsh,hk->bsk", ctx.astype(jnp.bfloat16), p["wo"],
                          preferred_element_type=jnp.float32) + p["bo"]
    h = ln(x + attn_out, p["ln1g"], p["ln1b"])
    ffn = jnp.einsum("bsh,hf->bsf", h.astype(jnp.bfloat16), p["w1"],
                     preferred_element_type=jnp.float32) + p["b1"]
    ffn = jax.nn.gelu(ffn, approximate=True)
    ffn = jnp.einsum("bsf,fh->bsh", ffn.astype(jnp.bfloat16), p["w2"],
                     preferred_element_type=jnp.float32) + p["b2"]
    h = ln(h + ffn, p["ln2g"], p["ln2b"])
    logits = jnp.einsum("bsh,oh->bso", h, p["wcls"]) + p["bcls"][0]
    return jax.nn.sigmoid(logits)


def make_params(key):
    ks = jax.random.split(key, 16)
    s = 0.02
    return {
        "word_emb": s * jax.random.normal(ks[0], (VOCAB, H), jnp.float32),
        "pos_emb":  s * jax.random.normal(ks[1], (S, H), jnp.float32),
        "type_emb": s * jax.random.normal(ks[2], (2, H), jnp.float32),
        "wqkv": s * jax.random.normal(ks[3], (H, 3 * H), jnp.float32),
        "bqkv": s * jax.random.normal(ks[4], (1, 3 * H), jnp.float32),
        "wo":   s * jax.random.normal(ks[5], (H, H), jnp.float32),
        "bo":   s * jax.random.normal(ks[6], (1, H), jnp.float32),
        "ln1g": 1.0 + s * jax.random.normal(ks[7], (1, H), jnp.float32),
        "ln1b": s * jax.random.normal(ks[8], (1, H), jnp.float32),
        "w1":   s * jax.random.normal(ks[9], (H, F), jnp.float32),
        "b1":   s * jax.random.normal(ks[10], (1, F), jnp.float32),
        "w2":   s * jax.random.normal(ks[11], (F, H), jnp.float32),
        "b2":   s * jax.random.normal(ks[12], (1, H), jnp.float32),
        "ln2g": 1.0 + s * jax.random.normal(ks[13], (1, H), jnp.float32),
        "ln2b": s * jax.random.normal(ks[14], (1, H), jnp.float32),
        # PyTorch Linear(H, 1): weight [1, H], scalar bias
        "wcls": s * jax.random.normal(ks[15], (1, H), jnp.float32),
        "bcls": jnp.full((1,), 0.1, jnp.float32),
    }


if __name__ == "__main__":
    key = jax.random.PRNGKey(0)
    k_param, k_ids = jax.random.split(key, 2)
    params = make_params(k_param)

    # deterministic example inputs (matching the module's forward signature)
    input_ids = jax.random.randint(k_ids, (B, S), 0, VOCAB, dtype=jnp.int32)
    attention_mask = jnp.ones((B, S), jnp.int32).at[1, S - 2:].set(0)   # pad tail of batch 1
    token_type_ids = jnp.zeros((B, S), jnp.int32).at[:, S // 2:].set(1)

    # glue: embedding lookup (f32), then a single cast to bf16 for MXU operands
    x_emb = (params["word_emb"][input_ids]
             + params["pos_emb"][None, :, :]
             + params["type_emb"][token_type_ids]).astype(jnp.float32)  # [B, S, H]
    x_bf16 = x_emb.astype(jnp.bfloat16)

    # bf16 copies of the large matmul weights; everything else stays f32
    kparams = dict(params)
    for name in ("wqkv", "wo", "w1", "w2"):
        kparams[name] = params[name].astype(jnp.bfloat16)

    # batched additive key mask (reference path)
    mask_bias = ((1.0 - attention_mask.astype(jnp.float32)) * -1e9)[:, None, :]   # [B,1,S]

    # block-diagonal [B*S, B*S] mask so the whole batch runs in one invocation
    T = B * S
    batch_of = jnp.repeat(jnp.arange(B), S)
    same_batch = batch_of[:, None] == batch_of[None, :]
    key_valid = attention_mask.reshape(-1).astype(bool)
    attn_bias = jnp.where(same_batch & key_valid[None, :], 0.0, -1e9).astype(jnp.float32)

    x_flat = x_bf16.reshape(T, H)

    out = deletion_summary_forward(x_flat, attn_bias, kparams)
    out = jax.block_until_ready(out)

    ref = reference_forward(x_bf16, mask_bias, kparams)
    assert out.shape == (B, S, 1)
    assert jnp.allclose(out, ref, rtol=1e-3, atol=2e-3), float(jnp.max(jnp.abs(out - ref)))

    print("KERNEL_OK")
</pallas_src>

<mosaic_0001>
module attributes {stable_mosaic.version = 11 : i64} {
  func.func @_encoder_head_kernel(%arg0: memref<16x128xbf16, #tpu.memory_space<vmem>>, %arg1: memref<16x16xf32, #tpu.memory_space<vmem>>, %arg2: memref<128x384xbf16, #tpu.memory_space<vmem>>, %arg3: memref<1x384xf32, #tpu.memory_space<vmem>>, %arg4: memref<128x128xbf16, #tpu.memory_space<vmem>>, %arg5: memref<1x128xf32, #tpu.memory_space<vmem>>, %arg6: memref<1x128xf32, #tpu.memory_space<vmem>>, %arg7: memref<1x128xf32, #tpu.memory_space<vmem>>, %arg8: memref<128x256xbf16, #tpu.memory_space<vmem>>, %arg9: memref<1x256xf32, #tpu.memory_space<vmem>>, %arg10: memref<256x128xbf16, #tpu.memory_space<vmem>>, %arg11: memref<1x128xf32, #tpu.memory_space<vmem>>, %arg12: memref<1x128xf32, #tpu.memory_space<vmem>>, %arg13: memref<1x128xf32, #tpu.memory_space<vmem>>, %arg14: memref<1x128xf32, #tpu.memory_space<vmem>>, %arg15: memref<1xf32, #tpu.memory_space<smem>>, %arg16: memref<1x16xf32, #tpu.memory_space<vmem>>) attributes {dimension_semantics = [], scalar_prefetch = 0 : i64, scratch_operands = 0 : i64, tpu.core_type = #tpu.core_type<tc>} {
    %c0 = arith.constant 0 : index
    %c0_0 = arith.constant 0 : index
    %0 = vector.load %arg0[%c0, %c0_0] : memref<16x128xbf16, #tpu.memory_space<vmem>>, vector<16x128xbf16>
    %1 = arith.extf %0 : vector<16x128xbf16> to vector<16x128xf32>
    %c0_1 = arith.constant 0 : index
    %c0_2 = arith.constant 0 : index
    %2 = vector.load %arg2[%c0_1, %c0_2] : memref<128x384xbf16, #tpu.memory_space<vmem>>, vector<128x384xbf16>
    %cst = arith.constant dense<0.000000e+00> : vector<16x384xf32>
    %3 = tpu.matmul %0, %2, %cst {dimension_numbers = #tpu.dot_dimension_numbers<[1], [0], [0], [1], [0, 0, 1, 1], [], []>} : vector<16x128xbf16>, vector<128x384xbf16>, vector<16x384xf32> -> vector<16x384xf32>
    %c0_3 = arith.constant 0 : index
    %c0_4 = arith.constant 0 : index
    %4 = vector.load %arg3[%c0_3, %c0_4] : memref<1x384xf32, #tpu.memory_space<vmem>>, vector<1x384xf32>
    %5 = vector.broadcast %4 : vector<1x384xf32> to vector<16x384xf32>
    %6 = arith.addf %3, %5 : vector<16x384xf32>
    %7 = vector.extract_strided_slice %6 {offsets = [0, 0], sizes = [16, 128], strides = [1, 1]} : vector<16x384xf32> to vector<16x128xf32>
    %8 = vector.extract_strided_slice %6 {offsets = [0, 128], sizes = [16, 128], strides = [1, 1]} : vector<16x384xf32> to vector<16x128xf32>
    %9 = vector.extract_strided_slice %6 {offsets = [0, 256], sizes = [16, 128], strides = [1, 1]} : vector<16x384xf32> to vector<16x128xf32>
    %cst_5 = arith.constant dense<0.000000e+00> : vector<16x16xf32>
    %10 = tpu.matmul %7, %8, %cst_5 {dimension_numbers = #tpu.dot_dimension_numbers<[1], [1], [0], [0], [0, 0, 1, 0], [], []>} : vector<16x128xf32>, vector<16x128xf32>, vector<16x16xf32> -> vector<16x16xf32>
    %cst_6 = arith.constant 0.0883883461 : f32
    %11 = vector.broadcast %cst_6 : f32 to vector<16x16xf32>
    %12 = arith.mulf %10, %11 : vector<16x16xf32>
    %c0_7 = arith.constant 0 : index
    %c0_8 = arith.constant 0 : index
    %13 = vector.load %arg1[%c0_7, %c0_8] : memref<16x16xf32, #tpu.memory_space<vmem>>, vector<16x16xf32>
    %14 = arith.addf %12, %13 : vector<16x16xf32>
    %cst_9 = arith.constant dense<0xFF800000> : vector<16xf32>
    %15 = vector.multi_reduction <maximumf>, %14, %cst_9 [1] : vector<16x16xf32> to vector<16xf32>
    %16 = vector.shape_cast %15 : vector<16xf32> to vector<16x1xf32>
    %17 = vector.broadcast %16 : vector<16x1xf32> to vector<16x16xf32>
    %18 = arith.subf %14, %17 : vector<16x16xf32>
    %19 = math.exp %18 : vector<16x16xf32>
    %cst_10 = arith.constant dense<0.000000e+00> : vector<16xf32>
    %20 = vector.multi_reduction <add>, %19, %cst_10 [1] : vector<16x16xf32> to vector<16xf32>
    %21 = vector.shape_cast %20 : vector<16xf32> to vector<16x1xf32>
    %22 = tpu.reciprocal %21 {approx = true} : vector<16x1xf32> -> vector<16x1xf32>
    %23 = vector.broadcast %22 : vector<16x1xf32> to vector<16x16xf32>
    %24 = arith.mulf %19, %23 : vector<16x16xf32>
    %cst_11 = arith.constant dense<0.000000e+00> : vector<16x128xf32>
    %25 = tpu.matmul %24, %9, %cst_11 {dimension_numbers = #tpu.dot_dimension_numbers<[1], [0], [0], [1], [0, 0, 1, 1], [], []>} : vector<16x16xf32>, vector<16x128xf32>, vector<16x128xf32> -> vector<16x128xf32>
    %26 = arith.truncf %25 : vector<16x128xf32> to vector<16x128xbf16>
    %c0_12 = arith.constant 0 : index
    %c0_13 = arith.constant 0 : index
    %27 = vector.load %arg4[%c0_12, %c0_13] : memref<128x128xbf16, #tpu.memory_space<vmem>>, vector<128x128xbf16>
    %cst_14 = arith.constant dense<0.000000e+00> : vector<16x128xf32>
    %28 = tpu.matmul %26, %27, %cst_14 {dimension_numbers = #tpu.dot_dimension_numbers<[1], [0], [0], [1], [0, 0, 1, 1], [], []>} : vector<16x128xbf16>, vector<128x128xbf16>, vector<16x128xf32> -> vector<16x128xf32>
    %c0_15 = arith.constant 0 : index
    %c0_16 = arith.constant 0 : index
    %29 = vector.load %arg5[%c0_15, %c0_16] : memref<1x128xf32, #tpu.memory_space<vmem>>, vector<1x128xf32>
    %30 = vector.broadcast %29 : vector<1x128xf32> to vector<16x128xf32>
    %31 = arith.addf %28, %30 : vector<16x128xf32>
    %32 = arith.addf %1, %31 : vector<16x128xf32>
    %c0_17 = arith.constant 0 : index
    %c0_18 = arith.constant 0 : index
    %33 = vector.load %arg6[%c0_17, %c0_18] : memref<1x128xf32, #tpu.memory_space<vmem>>, vector<1x128xf32>
    %c0_19 = arith.constant 0 : index
    %c0_20 = arith.constant 0 : index
    %34 = vector.load %arg7[%c0_19, %c0_20] : memref<1x128xf32, #tpu.memory_space<vmem>>, vector<1x128xf32>
    %cst_21 = arith.constant dense<0.000000e+00> : vector<16xf32>
    %35 = vector.multi_reduction <add>, %32, %cst_21 [1] : vector<16x128xf32> to vector<16xf32>
    %36 = vector.shape_cast %35 : vector<16xf32> to vector<16x1xf32>
    %cst_22 = arith.constant 1.280000e+02 : f32
    %37 = vector.broadcast %cst_22 : f32 to vector<16x1xf32>
    %38 = arith.divf %36, %37 : vector<16x1xf32>
    %39 = vector.broadcast %38 : vector<16x1xf32> to vector<16x128xf32>
    %40 = arith.subf %32, %39 : vector<16x128xf32>
    %41 = arith.mulf %40, %40 : vector<16x128xf32>
    %cst_23 = arith.constant dense<0.000000e+00> : vector<16xf32>
    %42 = vector.multi_reduction <add>, %41, %cst_23 [1] : vector<16x128xf32> to vector<16xf32>
    %43 = vector.shape_cast %42 : vector<16xf32> to vector<16x1xf32>
    %cst_24 = arith.constant 1.280000e+02 : f32
    %44 = vector.broadcast %cst_24 : f32 to vector<16x1xf32>
    %45 = arith.divf %43, %44 : vector<16x1xf32>
    %46 = vector.broadcast %38 : vector<16x1xf32> to vector<16x128xf32>
    %47 = arith.subf %32, %46 : vector<16x128xf32>
    %cst_25 = arith.constant 9.99999996E-13 : f32
    %48 = vector.broadcast %cst_25 : f32 to vector<16x1xf32>
    %49 = arith.addf %45, %48 : vector<16x1xf32>
    %50 = math.rsqrt %49 : vector<16x1xf32>
    %51 = vector.broadcast %50 : vector<16x1xf32> to vector<16x128xf32>
    %52 = arith.mulf %47, %51 : vector<16x128xf32>
    %53 = vector.broadcast %33 : vector<1x128xf32> to vector<16x128xf32>
    %54 = arith.mulf %52, %53 : vector<16x128xf32>
    %55 = vector.broadcast %34 : vector<1x128xf32> to vector<16x128xf32>
    %56 = arith.addf %54, %55 : vector<16x128xf32>
    %57 = arith.truncf %56 : vector<16x128xf32> to vector<16x128xbf16>
    %c0_26 = arith.constant 0 : index
    %c0_27 = arith.constant 0 : index
    %58 = vector.load %arg8[%c0_26, %c0_27] : memref<128x256xbf16, #tpu.memory_space<vmem>>, vector<128x256xbf16>
    %cst_28 = arith.constant dense<0.000000e+00> : vector<16x256xf32>
    %59 = tpu.matmul %57, %58, %cst_28 {dimension_numbers = #tpu.dot_dimension_numbers<[1], [0], [0], [1], [0, 0, 1, 1], [], []>} : vector<16x128xbf16>, vector<128x256xbf16>, vector<16x256xf32> -> vector<16x256xf32>
    %c0_29 = arith.constant 0 : index
    %c0_30 = arith.constant 0 : index
    %60 = vector.load %arg9[%c0_29, %c0_30] : memref<1x256xf32, #tpu.memory_space<vmem>>, vector<1x256xf32>
    %61 = vector.broadcast %60 : vector<1x256xf32> to vector<16x256xf32>
    %62 = arith.addf %59, %61 : vector<16x256xf32>
    %63 = arith.mulf %62, %62 : vector<16x256xf32>
    %64 = arith.mulf %62, %63 : vector<16x256xf32>
    %cst_31 = arith.constant 4.471500e-02 : f32
    %65 = vector.broadcast %cst_31 : f32 to vector<16x256xf32>
    %66 = arith.mulf %65, %64 : vector<16x256xf32>
    %67 = arith.addf %62, %66 : vector<16x256xf32>
    %cst_32 = arith.constant 0.797884583 : f32
    %68 = vector.broadcast %cst_32 : f32 to vector<16x256xf32>
    %69 = arith.mulf %68, %67 : vector<16x256xf32>
    %70 = math.tanh %69 : vector<16x256xf32>
    %cst_33 = arith.constant 1.000000e+00 : f32
    %71 = vector.broadcast %cst_33 : f32 to vector<16x256xf32>
    %72 = arith.addf %71, %70 : vector<16x256xf32>
    %cst_34 = arith.constant 5.000000e-01 : f32
    %73 = vector.broadcast %cst_34 : f32 to vector<16x256xf32>
    %74 = arith.mulf %73, %72 : vector<16x256xf32>
    %75 = arith.mulf %62, %74 : vector<16x256xf32>
    %76 = arith.truncf %75 : vector<16x256xf32> to vector<16x256xbf16>
    %c0_35 = arith.constant 0 : index
    %c0_36 = arith.constant 0 : index
    %77 = vector.load %arg10[%c0_35, %c0_36] : memref<256x128xbf16, #tpu.memory_space<vmem>>, vector<256x128xbf16>
    %cst_37 = arith.constant dense<0.000000e+00> : vector<16x128xf32>
    %78 = tpu.matmul %76, %77, %cst_37 {dimension_numbers = #tpu.dot_dimension_numbers<[1], [0], [0], [1], [0, 0, 1, 1], [], []>} : vector<16x256xbf16>, vector<256x128xbf16>, vector<16x128xf32> -> vector<16x128xf32>
    %c0_38 = arith.constant 0 : index
    %c0_39 = arith.constant 0 : index
    %79 = vector.load %arg11[%c0_38, %c0_39] : memref<1x128xf32, #tpu.memory_space<vmem>>, vector<1x128xf32>
    %80 = vector.broadcast %79 : vector<1x128xf32> to vector<16x128xf32>
    %81 = arith.addf %78, %80 : vector<16x128xf32>
    %82 = arith.addf %56, %81 : vector<16x128xf32>
    %c0_40 = arith.constant 0 : index
    %c0_41 = arith.constant 0 : index
    %83 = vector.load %arg12[%c0_40, %c0_41] : memref<1x128xf32, #tpu.memory_space<vmem>>, vector<1x128xf32>
    %c0_42 = arith.constant 0 : index
    %c0_43 = arith.constant 0 : index
    %84 = vector.load %arg13[%c0_42, %c0_43] : memref<1x128xf32, #tpu.memory_space<vmem>>, vector<1x128xf32>
    %cst_44 = arith.constant dense<0.000000e+00> : vector<16xf32>
    %85 = vector.multi_reduction <add>, %82, %cst_44 [1] : vector<16x128xf32> to vector<16xf32>
    %86 = vector.shape_cast %85 : vector<16xf32> to vector<16x1xf32>
    %cst_45 = arith.constant 1.280000e+02 : f32
    %87 = vector.broadcast %cst_45 : f32 to vector<16x1xf32>
    %88 = arith.divf %86, %87 : vector<16x1xf32>
    %89 = vector.broadcast %88 : vector<16x1xf32> to vector<16x128xf32>
    %90 = arith.subf %82, %89 : vector<16x128xf32>
    %91 = arith.mulf %90, %90 : vector<16x128xf32>
    %cst_46 = arith.constant dense<0.000000e+00> : vector<16xf32>
    %92 = vector.multi_reduction <add>, %91, %cst_46 [1] : vector<16x128xf32> to vector<16xf32>
    %93 = vector.shape_cast %92 : vector<16xf32> to vector<16x1xf32>
    %cst_47 = arith.constant 1.280000e+02 : f32
    %94 = vector.broadcast %cst_47 : f32 to vector<16x1xf32>
    %95 = arith.divf %93, %94 : vector<16x1xf32>
    %96 = vector.broadcast %88 : vector<16x1xf32> to vector<16x128xf32>
    %97 = arith.subf %82, %96 : vector<16x128xf32>
    %cst_48 = arith.constant 9.99999996E-13 : f32
    %98 = vector.broadcast %cst_48 : f32 to vector<16x1xf32>
    %99 = arith.addf %95, %98 : vector<16x1xf32>
    %100 = math.rsqrt %99 : vector<16x1xf32>
    %101 = vector.broadcast %100 : vector<16x1xf32> to vector<16x128xf32>
    %102 = arith.mulf %97, %101 : vector<16x128xf32>
    %103 = vector.broadcast %83 : vector<1x128xf32> to vector<16x128xf32>
    %104 = arith.mulf %102, %103 : vector<16x128xf32>
    %105 = vector.broadcast %84 : vector<1x128xf32> to vector<16x128xf32>
    %106 = arith.addf %104, %105 : vector<16x128xf32>
    %c0_49 = arith.constant 0 : index
    %c0_50 = arith.constant 0 : index
    %107 = vector.load %arg14[%c0_49, %c0_50] : memref<1x128xf32, #tpu.memory_space<vmem>>, vector<1x128xf32>
    %cst_51 = arith.constant dense<0.000000e+00> : vector<1x16xf32>
    %108 = tpu.matmul %107, %106, %cst_51 {dimension_numbers = #tpu.dot_dimension_numbers<[1], [1], [0], [0], [0, 0, 1, 0], [], []>} : vector<1x128xf32>, vector<16x128xf32>, vector<1x16xf32> -> vector<1x16xf32>
    %c0_52 = arith.constant 0 : index
    %109 = memref.load %arg15[%c0_52] : memref<1xf32, #tpu.memory_space<smem>>
    %110 = vector.broadcast %109 : f32 to vector<1x16xf32>
    %111 = arith.addf %108, %110 : vector<1x16xf32>
    %112 = arith.negf %111 : vector<1x16xf32>
    %113 = math.exp %112 : vector<1x16xf32>
    %cst_53 = arith.constant 1.000000e+00 : f32
    %114 = vector.broadcast %cst_53 : f32 to vector<1x16xf32>
    %115 = arith.addf %114, %113 : vector<1x16xf32>
    %116 = arith.divf %114, %115 : vector<1x16xf32>
    %c0_54 = arith.constant 0 : index
    %c0_55 = arith.constant 0 : index
    %117 = vector.load %arg16[%c0_54, %c0_55] : memref<1x16xf32, #tpu.memory_space<vmem>>, vector<1x16xf32>
    tpu.vector_store %arg16[%c0_54, %c0_55], %116 {strides = array<i32>} : memref<1x16xf32, #tpu.memory_space<vmem>>, vector<1x16xf32>,
    return
  }
}

</mosaic_0001>

<llo_original>
// kernel: tpu_custom_call.1
$region0: #{tpu_custom_call.1}
  #allocation0 [shape = 'u32[]', space=smem, size = 0x4, offset = 0x4, fixed_abs, tag = 'smem constant byte address 0x4 - core index']
  #allocation1 [shape = 'u32[144,128]{1,0:T(1,128)}', space=vmem, size = 0x12000, scoped, tag = 'internal scratch']
  #allocation2 [shape = 'f32[1]{0:T(128)S(6)}', space=smem, size = 0x200, scoped, tag = 'scoped memory for tpu_custom_call.1']
  %s0 = inlined_call_operand.hbm [shape: bf16[16,128], index: 0, kind: input, shape index: {}]
  %s1 = inlined_call_operand.hbm [shape: f32[16,16], index: 1, kind: input, shape index: {}]
  %s2 = inlined_call_operand.hbm [shape: bf16[128,384], index: 2, kind: input, shape index: {}]
  %s3 = inlined_call_operand.vmem [shape: f32[1,384], index: 3, kind: input, shape index: {}]
  %s4 = inlined_call_operand.hbm [shape: bf16[128,128], index: 4, kind: input, shape index: {}]
  %s5 = inlined_call_operand.vmem [shape: f32[1,128], index: 5, kind: input, shape index: {}]
  %s6 = inlined_call_operand.vmem [shape: f32[1,128], index: 6, kind: input, shape index: {}]
  %s7 = inlined_call_operand.vmem [shape: f32[1,128], index: 7, kind: input, shape index: {}]
  %s8 = inlined_call_operand.hbm [shape: bf16[128,256], index: 8, kind: input, shape index: {}]
  %s9 = inlined_call_operand.vmem [shape: f32[1,256], index: 9, kind: input, shape index: {}]
  %s10 = inlined_call_operand.hbm [shape: bf16[256,128], index: 10, kind: input, shape index: {}]
  %s11 = inlined_call_operand.vmem [shape: f32[1,128], index: 11, kind: input, shape index: {}]
  %s12 = inlined_call_operand.vmem [shape: f32[1,128], index: 12, kind: input, shape index: {}]
  %s13 = inlined_call_operand.vmem [shape: f32[1,128], index: 13, kind: input, shape index: {}]
  %s14 = inlined_call_operand.vmem [shape: f32[1,128], index: 14, kind: input, shape index: {}]
  %s15 = inlined_call_operand.<no memory space> [shape: f32[1], index: 15, kind: input, shape index: {}]
  %s16 = inlined_call_operand.hbm [shape: f32[1,16], index: 16, kind: output, shape index: {}]
  %s17 = sld [smem:[#allocation0]]
  $region98: #{tpu_custom_call.1} parent=0
    _
  %s19 = ssub.s32 1, %s17
  %s20 = scalar_select 0, %s19, %s17
  %21 = sst [smem:[#allocation2]] %s15
  $region1: #{tpu_custom_call.1} parent=0
    #allocation3 [shape = 'u8[4096]{0}', space=vmem, size = 0x1000, scoped, tag = 'input window, operand 0, single buffered']
    #allocation4 [shape = 's32[1]{0}', space=sflag, size = 0x4, scoped, tag = 'scoped memory for tpu_custom_call.1']
    #allocation5 [shape = 's32[1]{0}', space=sflag, size = 0x4, scoped, tag = 'scoped memory for tpu_custom_call.1']
    #allocation6 [shape = 'u8[8192]{0}', space=vmem, size = 0x2000, scoped, tag = 'input window, operand 1, single buffered']
    #allocation7 [shape = 's32[1]{0}', space=sflag, size = 0x4, scoped, tag = 'scoped memory for tpu_custom_call.1']
    #allocation8 [shape = 'u8[98304]{0}', space=vmem, size = 0x18000, scoped, tag = 'input window, operand 2, single buffered']
    #allocation9 [shape = 'u8[32768]{0}', space=vmem, size = 0x8000, scoped, tag = 'input window, operand 4, single buffered']
    #allocation10 [shape = 's32[1]{0}', space=sflag, size = 0x4, scoped, tag = 'scoped memory for tpu_custom_call.1']
    #allocation11 [shape = 'u8[65536]{0}', space=vmem, size = 0x10000, scoped, tag = 'input window, operand 8, single buffered']
    #allocation12 [shape = 'u8[65536]{0}', space=vmem, size = 0x10000, scoped, tag = 'input window, operand 10, single buffered']
    #allocation13 [shape = 's32[1]{0}', space=sflag, size = 0x4, scoped, tag = 'scoped memory for tpu_custom_call.1']
    #allocation14 [shape = 'u8[512]{0}', space=vmem, size = 0x400, scoped, tag = 'output window, operand 0, single buffered']
    %22 = vsyncpa [#allocation4], 0
    %23 = vsyncpa [#allocation7], 0
    %24 = vsyncpa [#allocation10], 0
    %25 = vsyncpa [#allocation13], 0
    %26 = vsyncpa [#allocation5], 0
    // Predicated region
    $region2: #{tpu_custom_call.1} parent=1 // pred_check
      _
    $region3: #{tpu_custom_call.1} parent=1 // pred_check_branch
      %28 = sbr.rel (0) target = $region5
    $region4: #{tpu_custom_call.1} parent=1 // pred_region
      %s30 = ssub.s32 128, 128
      %31 = vsyncadd [#allocation4], %s30
      %s32 = sshll.u32 [#allocation3], 4
      %s33 = int_to_ptr.vmem [resolvable:$true] %s32
      %38 = dma.hbm_to_vmem [thread:$0]  %s0, 128, %s33, [#allocation4], 64, 64, 4
    $region5: #{tpu_custom_call.1} parent=1 // pred_fallthru
      _
    // Predicated region
    $region6: #{tpu_custom_call.1} parent=1 // pred_check
      _
    $region7: #{tpu_custom_call.1} parent=1 // pred_check_branch
      %40 = sbr.rel (0) target = $region9
    $region8: #{tpu_custom_call.1} parent=1 // pred_region
      %s42 = ssub.s32 256, 256
      %43 = vsyncadd [#allocation7], %s42
      %s44 = sshll.u32 [#allocation6], 4
      %s45 = int_to_ptr.vmem [resolvable:$true] %s44
      %50 = dma.hbm_to_vmem [thread:$0]  %s1, 256, %s45, [#allocation7], 128, 128, 8
    $region9: #{tpu_custom_call.1} parent=1 // pred_fallthru
      _
    // Predicated region
    $region10: #{tpu_custom_call.1} parent=1 // pred_check
      _
    $region11: #{tpu_custom_call.1} parent=1 // pred_check_branch
      %52 = sbr.rel (0) target = $region13
    $region12: #{tpu_custom_call.1} parent=1 // pred_region
      %s54 = ssub.s32 3072, 3072
      %55 = vsyncadd [#allocation7], %s54
      %s56 = sshll.u32 [#allocation8], 4
      %s57 = int_to_ptr.vmem [resolvable:$true] %s56
      %62 = dma.hbm_to_vmem [thread:$0]  %s2, 3072, %s57, [#allocation7], 192, 192, 12
    $region13: #{tpu_custom_call.1} parent=1 // pred_fallthru
      _
    // Predicated region
    $region14: #{tpu_custom_call.1} parent=1 // pred_check
      _
    $region15: #{tpu_custom_call.1} parent=1 // pred_check_branch
      %64 = sbr.rel (0) target = $region17
    $region16: #{tpu_custom_call.1} parent=1 // pred_region
      _
    $region17: #{tpu_custom_call.1} parent=1 // pred_fallthru
      _
    // Predicated region
    $region18: #{tpu_custom_call.1} parent=1 // pred_check
      _
    $region19: #{tpu_custom_call.1} parent=1 // pred_check_branch
      %66 = sbr.rel (0) target = $region21
    $region20: #{tpu_custom_call.1} parent=1 // pred_region
      %s68 = ssub.s32 1024, 1024
      %69 = vsyncadd [#allocation10], %s68
      %s70 = sshll.u32 [#allocation9], 4
      %s71 = int_to_ptr.vmem [resolvable:$true] %s70
      %76 = dma.hbm_to_vmem [thread:$0]  %s4, 1024, %s71, [#allocation10], 64, 64, 4
    $region21: #{tpu_custom_call.1} parent=1 // pred_fallthru
      _
    // Predicated region
    $region22: #{tpu_custom_call.1} parent=1 // pred_check
      _
    $region23: #{tpu_custom_call.1} parent=1 // pred_check_branch
      %78 = sbr.rel (0) target = $region25
    $region24: #{tpu_custom_call.1} parent=1 // pred_region
      _
    $region25: #{tpu_custom_call.1} parent=1 // pred_fallthru
      _
    // Predicated region
    $region26: #{tpu_custom_call.1} parent=1 // pred_check
      _
    $region27: #{tpu_custom_call.1} parent=1 // pred_check_branch
      %80 = sbr.rel (0) target = $region29
    $region28: #{tpu_custom_call.1} parent=1 // pred_region
      _
    $region29: #{tpu_custom_call.1} parent=1 // pred_fallthru
      _
    // Predicated region
    $region30: #{tpu_custom_call.1} parent=1 // pred_check
      _
    $region31: #{tpu_custom_call.1} parent=1 // pred_check_branch
      %82 = sbr.rel (0) target = $region33
    $region32: #{tpu_custom_call.1} parent=1 // pred_region
      _
    $region33: #{tpu_custom_call.1} parent=1 // pred_fallthru
      _
    // Predicated region
    $region34: #{tpu_custom_call.1} parent=1 // pred_check
      _
    $region35: #{tpu_custom_call.1} parent=1 // pred_check_branch
      %84 = sbr.rel (0) target = $region37
    $region36: #{tpu_custom_call.1} parent=1 // pred_region
      %s86 = ssub.s32 2048, 2048
      %87 = vsyncadd [#allocation10], %s86
      %s88 = sshll.u32 [#allocation11], 4
      %s89 = int_to_ptr.vmem [resolvable:$true] %s88
      %94 = dma.hbm_to_vmem [thread:$0]  %s8, 2048, %s89, [#allocation10], 128, 128, 8
    $region37: #{tpu_custom_call.1} parent=1 // pred_fallthru
      _
    // Predicated region
    $region38: #{tpu_custom_call.1} parent=1 // pred_check
      _
    $region39: #{tpu_custom_call.1} parent=1 // pred_check_branch
      %96 = sbr.rel (0) target = $region41
    $region40: #{tpu_custom_call.1} parent=1 // pred_region
      _
    $region41: #{tpu_custom_call.1} parent=1 // pred_fallthru
      _
    // Predicated region
    $region42: #{tpu_custom_call.1} parent=1 // pred_check
      _
    $region43: #{tpu_custom_call.1} parent=1 // pred_check_branch
      %98 = sbr.rel (0) target = $region45
    $region44: #{tpu_custom_call.1} parent=1 // pred_region
      %s100 = ssub.s32 2048, 2048
      %101 = vsyncadd [#allocation13], %s100
      %s102 = sshll.u32 [#allocation12], 4
      %s103 = int_to_ptr.vmem [resolvable:$true] %s102
      %108 = dma.hbm_to_vmem [thread:$0]  %s10, 2048, %s103, [#allocation13], 64, 64, 4
    $region45: #{tpu_custom_call.1} parent=1 // pred_fallthru
      _
    // Predicated region
    $region46: #{tpu_custom_call.1} parent=1 // pred_check
      _
    $region47: #{tpu_custom_call.1} parent=1 // pred_check_branch
      %110 = sbr.rel (0) target = $region49
    $region48: #{tpu_custom_call.1} parent=1 // pred_region
      _
    $region49: #{tpu_custom_call.1} parent=1 // pred_fallthru
      _
    // Predicated region
    $region50: #{tpu_custom_call.1} parent=1 // pred_check
      _
    $region51: #{tpu_custom_call.1} parent=1 // pred_check_branch
      %112 = sbr.rel (0) target = $region53
    $region52: #{tpu_custom_call.1} parent=1 // pred_region
      _
    $region53: #{tpu_custom_call.1} parent=1 // pred_fallthru
      _
    // Predicated region
    $region54: #{tpu_custom_call.1} parent=1 // pred_check
      _
    $region55: #{tpu_custom_call.1} parent=1 // pred_check_branch
      %114 = sbr.rel (0) target = $region57
    $region56: #{tpu_custom_call.1} parent=1 // pred_region
      _
    $region57: #{tpu_custom_call.1} parent=1 // pred_fallthru
      _
    // Predicated region
    $region58: #{tpu_custom_call.1} parent=1 // pred_check
      _
    $region59: #{tpu_custom_call.1} parent=1 // pred_check_branch
      %116 = sbr.rel (0) target = $region61
    $region60: #{tpu_custom_call.1} parent=1 // pred_region
      _
    $region61: #{tpu_custom_call.1} parent=1 // pred_fallthru
      _
    // Predicated region
    $region62: #{tpu_custom_call.1} parent=1 // pred_check
      _
    $region63: #{tpu_custom_call.1} parent=1 // pred_check_branch
      %118 = sbr.rel (0) target = $region65
    $region64: #{tpu_custom_call.1} parent=1 // pred_region
      _
    $region65: #{tpu_custom_call.1} parent=1 // pred_fallthru
      _
    // Predicated region
    $region66: #{tpu_custom_call.1} parent=1 // pred_check
      _
    $region67: #{tpu_custom_call.1} parent=1 // pred_check_branch
      %120 = sbr.rel (0) target = $region69
    $region68: #{tpu_custom_call.1} parent=1 // pred_region
      %121 = dma.done [#allocation4], 128
    $region69: #{tpu_custom_call.1} parent=1 // pred_fallthru
      _
    // Predicated region
    $region70: #{tpu_custom_call.1} parent=1 // pred_check
      _
    $region71: #{tpu_custom_call.1} parent=1 // pred_check_branch
      %123 = sbr.rel (0) target = $region73
    $region72: #{tpu_custom_call.1} parent=1 // pred_region
      %124 = dma.done [#allocation7], 256
    $region73: #{tpu_custom_call.1} parent=1 // pred_fallthru
      _
    // Predicated region
    $region74: #{tpu_custom_call.1} parent=1 // pred_check
      _
    $region75: #{tpu_custom_call.1} parent=1 // pred_check_branch
      %126 = sbr.rel (0) target = $region77
    $region76: #{tpu_custom_call.1} parent=1 // pred_region
      %127 = dma.done [#allocation7], 3072
    $region77: #{tpu_custom_call.1} parent=1 // pred_fallthru
      _
    // Predicated region
    $region78: #{tpu_custom_call.1} parent=1 // pred_check
      _
    $region79: #{tpu_custom_call.1} parent=1 // pred_check_branch
      %129 = sbr.rel (0) target = $region81
    $region80: #{tpu_custom_call.1} parent=1 // pred_region
      %130 = dma.done [#allocation10], 1024
    $region81: #{tpu_custom_call.1} parent=1 // pred_fallthru
      _
    // Predicated region
    $region82: #{tpu_custom_call.1} parent=1 // pred_check
      _
    $region83: #{tpu_custom_call.1} parent=1 // pred_check_branch
      %132 = sbr.rel (0) target = $region85
    $region84: #{tpu_custom_call.1} parent=1 // pred_region
      %133 = dma.done [#allocation10], 2048
    $region85: #{tpu_custom_call.1} parent=1 // pred_fallthru
      _
    // Predicated region
    $region86: #{tpu_custom_call.1} parent=1 // pred_check
      _
    $region87: #{tpu_custom_call.1} parent=1 // pred_check_branch
      %135 = sbr.rel (0) target = $region89
    $region88: #{tpu_custom_call.1} parent=1 // pred_region
      %136 = dma.done [#allocation13], 2048
    $region89: #{tpu_custom_call.1} parent=1 // pred_fallthru
      _
    %v138 = vld [vmem:[#allocation3] sm:$0xf]
    %v139 = vld [vmem:[#allocation3 + $0x4] sm:$0xf]
    %v140 = vunpack.c.l.bf16 %v138
    %v141 = vunpack.c.l.bf16 %v139
    %v142 = vld [vmem:[#allocation8] sm:$0xff]
    %v143 = vld [vmem:[#allocation8 + $0x8] sm:$0xf]
    %v144 = vld [vmem:[#allocation8 + $0xc] sm:$0xff]
    %v145 = vld [vmem:[#allocation8 + $0x14] sm:$0xf]
    %v146 = vld [vmem:[#allocation8 + $0x18] sm:$0xff]
    %v147 = vld [vmem:[#allocation8 + $0x20] sm:$0xf]
    %v148 = vld [vmem:[#allocation8 + $0x24] sm:$0xff]
    %v149 = vld [vmem:[#allocation8 + $0x2c] sm:$0xf]
    %v150 = vld [vmem:[#allocation8 + $0x30] sm:$0xff]
    %v151 = vld [vmem:[#allocation8 + $0x38] sm:$0xf]
    %v152 = vld [vmem:[#allocation8 + $0x3c] sm:$0xff]
    %v153 = vld [vmem:[#allocation8 + $0x44] sm:$0xf]
    %v154 = vld [vmem:[#allocation8 + $0x48] sm:$0xff]
    %v155 = vld [vmem:[#allocation8 + $0x50] sm:$0xf]
    %v156 = vld [vmem:[#allocation8 + $0x54] sm:$0xff]
    %v157 = vld [vmem:[#allocation8 + $0x5c] sm:$0xf]
    %v158 = vld [vmem:[#allocation8 + $0x60] sm:$0xff]
    %v159 = vld [vmem:[#allocation8 + $0x68] sm:$0xf]
    %v160 = vld [vmem:[#allocation8 + $0x6c] sm:$0xff]
    %v161 = vld [vmem:[#allocation8 + $0x74] sm:$0xf]
    %v162 = vld [vmem:[#allocation8 + $0x78] sm:$0xff]
    %v163 = vld [vmem:[#allocation8 + $0x80] sm:$0xf]
    %v164 = vld [vmem:[#allocation8 + $0x84] sm:$0xff]
    %v165 = vld [vmem:[#allocation8 + $0x8c] sm:$0xf]
    %v166 = vld [vmem:[#allocation8 + $0x90] sm:$0xff]
    %v167 = vld [vmem:[#allocation8 + $0x98] sm:$0xf]
    %v168 = vld [vmem:[#allocation8 + $0x9c] sm:$0xff]
    %v169 = vld [vmem:[#allocation8 + $0xa4] sm:$0xf]
    %v170 = vld [vmem:[#allocation8 + $0xa8] sm:$0xff]
    %v171 = vld [vmem:[#allocation8 + $0xb0] sm:$0xf]
    %v172 = vld [vmem:[#allocation8 + $0xb4] sm:$0xff]
    %v173 = vld [vmem:[#allocation8 + $0xbc] sm:$0xf]
    %v174 = vld [vmem:[%s3] sm:$0x7]
    %v176 = vlaneseq
    %v177 = vshrl.u32 %v176, 7
    %v178 = vsub.s32 0, %v177
    %v179 = vrot.slane %v174, %v178
    %v180 = vlaneseq
    %v181 = vshrl.u32 %v180, 7
    %v182 = vsub.s32 1, %v181
    %v183 = vrot.slane %v174, %v182
    %v184 = vlaneseq
    %v185 = vshrl.u32 %v184, 7
    %v186 = vsub.s32 2, %v185
    %v187 = vrot.slane %v174, %v186
    %v193 = vunpack.c.l.b16 %v138
    %v194 = vunpack.c.l.b16 %v139
    %v195 = vpack.c.b16 %v194, %v193
    %v229 = vunpack.c.l.b16 %v142
    %v230 = vunpack.c.h.b16 %v142
    %v231 = vunpack.c.l.b16 %v143
    %v232 = vunpack.c.l.b16 %v144
    %v233 = vunpack.c.h.b16 %v144
    %v234 = vunpack.c.l.b16 %v145
    %v235 = vunpack.c.l.b16 %v146
    %v236 = vunpack.c.h.b16 %v146
    %v237 = vunpack.c.l.b16 %v147
    %v238 = vunpack.c.l.b16 %v148
    %v239 = vunpack.c.h.b16 %v148
    %v240 = vunpack.c.l.b16 %v149
    %v241 = vunpack.c.l.b16 %v150
    %v242 = vunpack.c.h.b16 %v150
    %v243 = vunpack.c.l.b16 %v151
    %v244 = vunpack.c.l.b16 %v152
    %v245 = vunpack.c.h.b16 %v152
    %v246 = vunpack.c.l.b16 %v153
    %v247 = vunpack.c.l.b16 %v154
    %v248 = vunpack.c.h.b16 %v154
    %v249 = vunpack.c.l.b16 %v155
    %v250 = vunpack.c.l.b16 %v156
    %v251 = vunpack.c.h.b16 %v156
    %v252 = vunpack.c.l.b16 %v157
    %v253 = vunpack.c.l.b16 %v158
    %v254 = vunpack.c.h.b16 %v158
    %v255 = vunpack.c.l.b16 %v159
    %v256 = vunpack.c.l.b16 %v160
    %v257 = vunpack.c.h.b16 %v160
    %v258 = vunpack.c.l.b16 %v161
    %v259 = vunpack.c.l.b16 %v162
    %v260 = vunpack.c.h.b16 %v162
    %v261 = vunpack.c.l.b16 %v163
    %v262 = vunpack.c.l.b16 %v164
    %v263 = vunpack.c.h.b16 %v164
    %v264 = vunpack.c.l.b16 %v165
    %v265 = vunpack.c.l.b16 %v166
    %v266 = vunpack.c.h.b16 %v166
    %v267 = vunpack.c.l.b16 %v167
    %v268 = vunpack.c.l.b16 %v168
    %v269 = vunpack.c.h.b16 %v168
    %v270 = vunpack.c.l.b16 %v169
    %v271 = vunpack.c.l.b16 %v170
    %v272 = vunpack.c.h.b16 %v170
    %v273 = vunpack.c.l.b16 %v171
    %v274 = vunpack.c.l.b16 %v172
    %v275 = vunpack.c.h.b16 %v172
    %v276 = vunpack.c.l.b16 %v173
    %v277 = vpack.c.b16 %v232, %v229
    %v278 = vpack.c.b16 %v233, %v230
    %v279 = vpack.c.b16 %v234, %v231
    %v280 = vpack.c.b16 %v238, %v235
    %v281 = vpack.c.b16 %v239, %v236
    %v282 = vpack.c.b16 %v240, %v237
    %v283 = vpack.c.b16 %v244, %v241
    %v284 = vpack.c.b16 %v245, %v242
    %v285 = vpack.c.b16 %v246, %v243
    %v286 = vpack.c.b16 %v250, %v247
    %v287 = vpack.c.b16 %v251, %v248
    %v288 = vpack.c.b16 %v252, %v249
    %v289 = vpack.c.b16 %v256, %v253
    %v290 = vpack.c.b16 %v257, %v254
    %v291 = vpack.c.b16 %v258, %v255
    %v292 = vpack.c.b16 %v262, %v259
    %v293 = vpack.c.b16 %v263, %v260
    %v294 = vpack.c.b16 %v264, %v261
    %v295 = vpack.c.b16 %v268, %v265
    %v296 = vpack.c.b16 %v269, %v266
    %v297 = vpack.c.b16 %v270, %v267
    %v298 = vpack.c.b16 %v274, %v271
    %v299 = vpack.c.b16 %v275, %v272
    %v300 = vpack.c.b16 %v276, %v273
    %325 = vmatprep.subr.bf16.mxu0 %v278
    %326 = vmatpush1.bf16.msra.mxu0 %v277
    %327 = vmatprep.subr.bf16.mxu0 %v281
    %328 = vmatpush1.bf16.msra.mxu0 %v280
    %329 = vmatprep.subr.bf16.mxu0 %v284
    %330 = vmatpush1.bf16.msra.mxu0 %v283
    %331 = vmatprep.subr.bf16.mxu0 %v287
    %332 = vmatpush1.bf16.msra.mxu0 %v286
    %333 = vmatprep.subr.bf16.mxu0 %v290
    %334 = vmatpush1.bf16.msra.mxu0 %v289
    %335 = vmatprep.subr.bf16.mxu0 %v293
    %336 = vmatpush1.bf16.msra.mxu0 %v292
    %337 = vmatprep.subr.bf16.mxu0 %v296
    %338 = vmatpush1.bf16.msra.mxu0 %v295
    %339 = vmatprep.subr.bf16.mxu0 %v299
    %340 = vmatpush1.bf16.msra.mxu0 %v298
    %341 = vmatprep.subr.bf16.mxu0 0
    %342 = vmatpush1.bf16.msra.mxu0 0
    %343 = vmatprep.subr.bf16.mxu0 0
    %344 = vmatpush1.bf16.msra.mxu0 0
    %345 = vmatprep.subr.bf16.mxu0 0
    %346 = vmatpush1.bf16.msra.mxu0 0
    %347 = vmatprep.subr.bf16.mxu0 0
    %348 = vmatpush1.bf16.msra.mxu0 0
    %349 = vmatprep.subr.bf16.mxu0 0
    %350 = vmatpush1.bf16.msra.mxu0 0
    %351 = vmatprep.subr.bf16.mxu0 0
    %352 = vmatpush1.bf16.msra.mxu0 0
    %353 = vmatprep.subr.bf16.mxu0 0
    %354 = vmatpush1.bf16.msra.mxu0 0
    %355 = vmatprep.subr.bf16.mxu0 0
    %356 = vmatpush1.bf16.msra.mxu0 0
    %357 = vmatprep.mubr.bf16.mxu0 0
    %358 = vmatmul.mubr.bf16.gmra.mrb[0].mxu0 %v195
    %v359 = vpop.f32.mrb[0].mxu0
    %v360 = vadd.f32 %v179, %v359
    %v361 = vpop.f32.mrb[0].mxu0
    %v362 = vadd.f32 %v183, %v361
    %v363 = vpop.f32.mrb[0].mxu0
    %v364 = vadd.f32 %v179, %v363
    %v365 = vpop.f32.mrb[0].mxu0
    %v366 = vadd.f32 %v183, %v365
    %367 = vdwg.mxu0
    %368 = vmatprep.subr.bf16.mxu0 0
    %369 = vmatpush1.bf16.msra.mxu0 %v279
    %370 = vmatprep.subr.bf16.mxu0 0
    %371 = vmatpush1.bf16.msra.mxu0 %v282
    %372 = vmatprep.subr.bf16.mxu0 0
    %373 = vmatpush1.bf16.msra.mxu0 %v285
    %374 = vmatprep.subr.bf16.mxu0 0
    %375 = vmatpush1.bf16.msra.mxu0 %v288
    %376 = vmatprep.subr.bf16.mxu0 0
    %377 = vmatpush1.bf16.msra.mxu0 %v291
    %378 = vmatprep.subr.bf16.mxu0 0
    %379 = vmatpush1.bf16.msra.mxu0 %v294
    %380 = vmatprep.subr.bf16.mxu0 0
    %381 = vmatpush1.bf16.msra.mxu0 %v297
    %382 = vmatprep.subr.bf16.mxu0 0
    %383 = vmatpush1.bf16.msra.mxu0 %v300
    %384 = vmatprep.subr.bf16.mxu0 0
    %385 = vmatpush1.bf16.msra.mxu0 0
    %386 = vmatprep.subr.bf16.mxu0 0
    %387 = vmatpush1.bf16.msra.mxu0 0
    %388 = vmatprep.subr.bf16.mxu0 0
    %389 = vmatpush1.bf16.msra.mxu0 0
    %390 = vmatprep.subr.bf16.mxu0 0
    %391 = vmatpush1.bf16.msra.mxu0 0
    %392 = vmatprep.subr.bf16.mxu0 0
    %393 = vmatpush1.bf16.msra.mxu0 0
    %394 = vmatprep.subr.bf16.mxu0 0
    %395 = vmatpush1.bf16.msra.mxu0 0
    %396 = vmatprep.subr.bf16.mxu0 0
    %397 = vmatpush1.bf16.msra.mxu0 0
    %398 = vmatprep.subr.bf16.mxu0 0
    %399 = vmatpush1.bf16.msra.mxu0 0
    %400 = vmatprep.mubr.bf16.mxu0 0
    %401 = vmatmul.mubr.bf16.gmra.mrb[0].mxu0 %v195
    %v402 = vpop.f32.mrb[0].mxu0
    %v403 = vadd.f32 %v187, %v402
    %v404 = vpop.f32.mrb[0].mxu0
    %v405 = vpop.f32.mrb[0].mxu0
    %v406 = vadd.f32 %v187, %v405
    %v407 = vpop.f32.mrb[0].mxu0
    %408 = vdwg.mxu0
    %409 = vmatprep.subr.mxu0 0.0
    %410 = vmatpush1.xpose.msra.mxu0 %v362
    %411 = vmatprep.subr.mxu0 0.0
    %412 = vmatpush1.xpose.msra.mxu0 %v366
    %413 = vmatprep.subr.mxu0 0.0
    %414 = vmatpush1.xpose.msra.mxu0 0.0
    %415 = vmatprep.subr.mxu0 0.0
    %416 = vmatpush1.xpose.msra.mxu0 0.0
    %417 = vmatprep.subr.mxu0 0.0
    %418 = vmatpush1.xpose.msra.mxu0 0.0
    %419 = vmatprep.subr.mxu0 0.0
    %420 = vmatpush1.xpose.msra.mxu0 0.0
    %421 = vmatprep.subr.mxu0 0.0
    %422 = vmatpush1.xpose.msra.mxu0 0.0
    %423 = vmatprep.subr.mxu0 0.0
    %424 = vmatpush1.xpose.msra.mxu0 0.0
    %425 = vmatprep.subr.mxu0 0.0
    %426 = vmatpush1.xpose.msra.mxu0 0.0
    %427 = vmatprep.subr.mxu0 0.0
    %428 = vmatpush1.xpose.msra.mxu0 0.0
    %429 = vmatprep.subr.mxu0 0.0
    %430 = vmatpush1.xpose.msra.mxu0 0.0
    %431 = vmatprep.subr.mxu0 0.0
    %432 = vmatpush1.xpose.msra.mxu0 0.0
    %433 = vmatprep.subr.mxu0 0.0
    %434 = vmatpush1.xpose.msra.mxu0 0.0
    %435 = vmatprep.subr.mxu0 0.0
    %436 = vmatpush1.xpose.msra.mxu0 0.0
    %437 = vmatprep.subr.mxu0 0.0
    %438 = vmatpush1.xpose.msra.mxu0 0.0
    %439 = vmatprep.subr.mxu0 0.0
    %440 = vmatpush1.xpose.msra.mxu0 0.0
    %441 = vmatprep.subr.mxu0 0.0
    %442 = vmatpush1.xpose.msra.mxu0 0.0
    %443 = vmatprep.subr.mxu0 0.0
    %444 = vmatpush1.xpose.msra.mxu0 0.0
    %445 = vmatprep.subr.mxu0 0.0
    %446 = vmatpush1.xpose.msra.mxu0 0.0
    %447 = vmatprep.subr.mxu0 0.0
    %448 = vmatpush1.xpose.msra.mxu0 0.0
    %449 = vmatprep.subr.mxu0 0.0
    %450 = vmatpush1.xpose.msra.mxu0 0.0
    %451 = vmatprep.subr.mxu0 0.0
    %452 = vmatpush1.xpose.msra.mxu0 0.0
    %453 = vmatprep.subr.mxu0 0.0
    %454 = vmatpush1.xpose.msra.mxu0 0.0
    %455 = vmatprep.subr.mxu0 0.0
    %456 = vmatpush1.xpose.msra.mxu0 0.0
    %457 = vmatprep.subr.mxu0 0.0
    %458 = vmatpush1.xpose.msra.mxu0 0.0
    %459 = vmatprep.subr.mxu0 0.0
    %460 = vmatpush1.xpose.msra.mxu0 0.0
    %461 = vmatprep.subr.mxu0 0.0
    %462 = vmatpush1.xpose.msra.mxu0 0.0
    %463 = vmatprep.subr.mxu0 0.0
    %464 = vmatpush1.xpose.msra.mxu0 0.0
    %465 = vmatprep.subr.mxu0 0.0
    %466 = vmatpush1.xpose.msra.mxu0 0.0
    %467 = vmatprep.subr.mxu0 0.0
    %468 = vmatpush1.xpose.msra.mxu0 0.0
    %469 = vmatprep.subr.mxu0 0.0
    %470 = vmatpush1.xpose.msra.mxu0 0.0
    %471 = vmatprep.subr.mxu0 0.0
    %472 = vmatpush1.xpose.msra.mxu0 0.0
    %473 = vmatprep.mubr.f32.mxu0 0.0
    %474 = vmatmul.mubr.f32.gmra.mrb[0].mxu0 %v360
    %v475 = vpop.f32.mrb[0].mxu0
    %v476 = vadd.f32 0.0, %v475
    %v477 = vpop.f32.mrb[0].mxu0
    %478 = vmatprep.mubr.f32.mxu0 0.0
    %479 = vmatmul.mubr.f32.gmra.mrb[0].mxu0 %v364
    %v480 = vpop.f32.mrb[0].mxu0
    %v481 = vadd.f32 0.0, %v480
    %v482 = vpop.f32.mrb[0].mxu0
    %483 = vdwg.mxu0
    %v484 = vmul.f32 %v476, 0.088388346
    %v485 = vmul.f32 %v481, 0.088388346
    %v486 = vld [vmem:[#allocation6] sm:$0xff]
    %v487 = vld [vmem:[#allocation6 + $0x8] sm:$0xff]
    %v488 = vadd.f32 %v484, %v486
    %v489 = vadd.f32 %v485, %v487
    %vm490 = vcmask 130048
    %v491 = vsel %vm490, %v488, -inf
    %492 = vmax.xlane.f32.xlu0 %v491
    %v493 = vpop.xlane.xlu0 %492
    %v494 = vsel %vm490, %v489, -inf
    %495 = vmax.xlane.f32.xlu0 %v494
    %v496 = vpop.xlane.xlu0 %495
    %v497 = vsub.f32 %v488, %v493
    %v498 = vsub.f32 %v489, %v496
    %v499 = vmul.f32 %v497, 1.442695
    %v500 = vpow.pop %v499
    %v501 = vmul.f32 %v498, 1.442695
    %v502 = vpow.pop %v501
    %v503 = vsel %vm490, %v500, 0.0
    %504 = vadd.xlane.f32.xlu0 %v503
    %v505 = vpop.xlane.xlu0 %504
    %v506 = vsel %vm490, %v502, 0.0
    %507 = vadd.xlane.f32.xlu0 %v506
    %v508 = vpop.xlane.xlu0 %507
    %v509 = vrcp.pop %v505
    %v510 = vrcp.pop %v508
    %v511 = vmul.f32 %v500, %v509
    %v512 = vmul.f32 %v502, %v510
    %v514 = vsel %vm490, %v511, 0
    %v517 = vsel %vm490, %v512, 0
    %519 = vmatprep.subr.mxu0 0.0
    %520 = vmatpush1.msra.mxu0 %v403
    %521 = vmatprep.subr.mxu0 0.0
    %522 = vmatpush1.msra.mxu0 %v406
    %523 = vmatprep.subr.mxu0 0.0
    %524 = vmatpush1.msra.mxu0 0.0
    %525 = vmatprep.subr.mxu0 0.0
    %526 = vmatpush1.msra.mxu0 0.0
    %527 = vmatprep.subr.mxu0 0.0
    %528 = vmatpush1.msra.mxu0 0.0
    %529 = vmatprep.subr.mxu0 0.0
    %530 = vmatpush1.msra.mxu0 0.0
    %531 = vmatprep.subr.mxu0 0.0
    %532 = vmatpush1.msra.mxu0 0.0
    %533 = vmatprep.subr.mxu0 0.0
    %534 = vmatpush1.msra.mxu0 0.0
    %535 = vmatprep.subr.mxu0 0.0
    %536 = vmatpush1.msra.mxu0 0.0
    %537 = vmatprep.subr.mxu0 0.0
    %538 = vmatpush1.msra.mxu0 0.0
    %539 = vmatprep.subr.mxu0 0.0
    %540 = vmatpush1.msra.mxu0 0.0
    %541 = vmatprep.subr.mxu0 0.0
    %542 = vmatpush1.msra.mxu0 0.0
    %543 = vmatprep.subr.mxu0 0.0
    %544 = vmatpush1.msra.mxu0 0.0
    %545 = vmatprep.subr.mxu0 0.0
    %546 = vmatpush1.msra.mxu0 0.0
    %547 = vmatprep.subr.mxu0 0.0
    %548 = vmatpush1.msra.mxu0 0.0
    %549 = vmatprep.subr.mxu0 0.0
    %550 = vmatpush1.msra.mxu0 0.0
    %551 = vmatprep.subr.mxu0 0.0
    %552 = vmatpush1.msra.mxu0 0.0
    %553 = vmatprep.subr.mxu0 0.0
    %554 = vmatpush1.msra.mxu0 0.0
    %555 = vmatprep.subr.mxu0 0.0
    %556 = vmatpush1.msra.mxu0 0.0
    %557 = vmatprep.subr.mxu0 0.0
    %558 = vmatpush1.msra.mxu0 0.0
    %559 = vmatprep.subr.mxu0 0.0
    %560 = vmatpush1.msra.mxu0 0.0
    %561 = vmatprep.subr.mxu0 0.0
    %562 = vmatpush1.msra.mxu0 0.0
    %563 = vmatprep.subr.mxu0 0.0
    %564 = vmatpush1.msra.mxu0 0.0
    %565 = vmatprep.subr.mxu0 0.0
    %566 = vmatpush1.msra.mxu0 0.0
    %567 = vmatprep.subr.mxu0 0.0
    %568 = vmatpush1.msra.mxu0 0.0
    %569 = vmatprep.subr.mxu0 0.0
    %570 = vmatpush1.msra.mxu0 0.0
    %571 = vmatprep.subr.mxu0 0.0
    %572 = vmatpush1.msra.mxu0 0.0
    %573 = vmatprep.subr.mxu0 0.0
    %574 = vmatpush1.msra.mxu0 0.0
    %575 = vmatprep.subr.mxu0 0.0
    %576 = vmatpush1.msra.mxu0 0.0
    %577 = vmatprep.subr.mxu0 0.0
    %578 = vmatpush1.msra.mxu0 0.0
    %579 = vmatprep.subr.mxu0 0.0
    %580 = vmatpush1.msra.mxu0 0.0
    %581 = vmatprep.subr.mxu0 0.0
    %582 = vmatpush1.msra.mxu0 0.0
    %583 = vmatprep.mubr.f32.mxu0 0.0
    %584 = vmatmul.mubr.f32.gmra.mrb[0].mxu0 %v514
    %v585 = vpop.f32.mrb[0].mxu0
    %v586 = vadd.f32 0.0, %v585
    %v587 = vpop.f32.mrb[0].mxu0
    %588 = vmatprep.mubr.f32.mxu0 0.0
    %589 = vmatmul.mubr.f32.gmra.mrb[0].mxu0 %v517
    %v590 = vpop.f32.mrb[0].mxu0
    %v591 = vadd.f32 0.0, %v590
    %v592 = vpop.f32.mrb[0].mxu0
    %593 = vdwg.mxu0
    %v594 = vpack.c.bf16 %v591, %v586
    %v595 = vld [vmem:[#allocation9] sm:$0xf]
    %v596 = vld [vmem:[#allocation9 + $0x4] sm:$0xf]
    %v597 = vld [vmem:[#allocation9 + $0x8] sm:$0xf]
    %v598 = vld [vmem:[#allocation9 + $0xc] sm:$0xf]
    %v599 = vld [vmem:[#allocation9 + $0x10] sm:$0xf]
    %v600 = vld [vmem:[#allocation9 + $0x14] sm:$0xf]
    %v601 = vld [vmem:[#allocation9 + $0x18] sm:$0xf]
    %v602 = vld [vmem:[#allocation9 + $0x1c] sm:$0xf]
    %v603 = vld [vmem:[#allocation9 + $0x20] sm:$0xf]
    %v604 = vld [vmem:[#allocation9 + $0x24] sm:$0xf]
    %v605 = vld [vmem:[#allocation9 + $0x28] sm:$0xf]
    %v606 = vld [vmem:[#allocation9 + $0x2c] sm:$0xf]
    %v607 = vld [vmem:[#allocation9 + $0x30] sm:$0xf]
    %v608 = vld [vmem:[#allocation9 + $0x34] sm:$0xf]
    %v609 = vld [vmem:[#allocation9 + $0x38] sm:$0xf]
    %v610 = vld [vmem:[#allocation9 + $0x3c] sm:$0xf]
    %v611 = vld [vmem:[%s5] sm:$0x1]
    %v613 = vlaneseq
    %v614 = vshrl.u32 %v613, 7
    %v615 = vsub.s32 0, %v614
    %v616 = vrot.slane %v611, %v615
    %v634 = vunpack.c.l.b16 %v595
    %v635 = vunpack.c.l.b16 %v596
    %v636 = vunpack.c.l.b16 %v597
    %v637 = vunpack.c.l.b16 %v598
    %v638 = vunpack.c.l.b16 %v599
    %v639 = vunpack.c.l.b16 %v600
    %v640 = vunpack.c.l.b16 %v601
    %v641 = vunpack.c.l.b16 %v602
    %v642 = vunpack.c.l.b16 %v603
    %v643 = vunpack.c.l.b16 %v604
    %v644 = vunpack.c.l.b16 %v605
    %v645 = vunpack.c.l.b16 %v606
    %v646 = vunpack.c.l.b16 %v607
    %v647 = vunpack.c.l.b16 %v608
    %v648 = vunpack.c.l.b16 %v609
    %v649 = vunpack.c.l.b16 %v610
    %v650 = vpack.c.b16 %v635, %v634
    %v651 = vpack.c.b16 %v637, %v636
    %v652 = vpack.c.b16 %v639, %v638
    %v653 = vpack.c.b16 %v641, %v640
    %v654 = vpack.c.b16 %v643, %v642
    %v655 = vpack.c.b16 %v645, %v644
    %v656 = vpack.c.b16 %v647, %v646
    %v657 = vpack.c.b16 %v649, %v648
    %666 = vmatprep.subr.bf16.mxu0 0
    %667 = vmatpush1.bf16.msra.mxu0 %v650
    %668 = vmatprep.subr.bf16.mxu0 0
    %669 = vmatpush1.bf16.msra.mxu0 %v651
    %670 = vmatprep.subr.bf16.mxu0 0
    %671 = vmatpush1.bf16.msra.mxu0 %v652
    %672 = vmatprep.subr.bf16.mxu0 0
    %673 = vmatpush1.bf16.msra.mxu0 %v653
    %674 = vmatprep.subr.bf16.mxu0 0
    %675 = vmatpush1.bf16.msra.mxu0 %v654
    %676 = vmatprep.subr.bf16.mxu0 0
    %677 = vmatpush1.bf16.msra.mxu0 %v655
    %678 = vmatprep.subr.bf16.mxu0 0
    %679 = vmatpush1.bf16.msra.mxu0 %v656
    %680 = vmatprep.subr.bf16.mxu0 0
    %681 = vmatpush1.bf16.msra.mxu0 %v657
    %682 = vmatprep.subr.bf16.mxu0 0
    %683 = vmatpush1.bf16.msra.mxu0 0
    %684 = vmatprep.subr.bf16.mxu0 0
    %685 = vmatpush1.bf16.msra.mxu0 0
    %686 = vmatprep.subr.bf16.mxu0 0
    %687 = vmatpush1.bf16.msra.mxu0 0
    %688 = vmatprep.subr.bf16.mxu0 0
    %689 = vmatpush1.bf16.msra.mxu0 0
    %690 = vmatprep.subr.bf16.mxu0 0
    %691 = vmatpush1.bf16.msra.mxu0 0
    %692 = vmatprep.subr.bf16.mxu0 0
    %693 = vmatpush1.bf16.msra.mxu0 0
    %694 = vmatprep.subr.bf16.mxu0 0
    %695 = vmatpush1.bf16.msra.mxu0 0
    %696 = vmatprep.subr.bf16.mxu0 0
    %697 = vmatpush1.bf16.msra.mxu0 0
    %698 = vmatprep.mubr.bf16.mxu0 0
    %699 = vmatmul.mubr.bf16.gmra.mrb[0].mxu0 %v594
    %v700 = vpop.f32.mrb[0].mxu0
    %v701 = vadd.f32 %v616, %v700
    %v702 = vpop.f32.mrb[0].mxu0
    %v703 = vpop.f32.mrb[0].mxu0
    %v704 = vadd.f32 %v616, %v703
    %v705 = vpop.f32.mrb[0].mxu0
    %706 = vdwg.mxu0
    %v707 = vadd.f32 %v140, %v701
    %v708 = vadd.f32 %v141, %v704
    %v709 = vld [vmem:[%s6] sm:$0x1]
    %v710 = vld [vmem:[%s7] sm:$0x1]
    %711 = vadd.xlane.f32.xlu0 %v707
    %v712 = vpop.xlane.xlu0 %711
    %713 = vadd.xlane.f32.xlu0 %v708
    %v714 = vpop.xlane.xlu0 %713
    %v715 = vrcp.pop 128.0
    %v716 = vmul.f32 %v712, %v715
    %v717 = vmul.f32 %v714, %v715
    %v718 = vsub.f32 %v707, %v716
    %v719 = vsub.f32 %v708, %v717
    %v720 = vmul.f32 %v718, %v718
    %v721 = vmul.f32 %v719, %v719
    %722 = vadd.xlane.f32.xlu0 %v720
    %v723 = vpop.xlane.xlu0 %722
    %724 = vadd.xlane.f32.xlu0 %v721
    %v725 = vpop.xlane.xlu0 %724
    %v726 = vmul.f32 %v723, %v715
    %v727 = vmul.f32 %v725, %v715
    %v728 = vadd.f32 %v726, 1e-12
    %v729 = vadd.f32 %v727, 1e-12
    %v730 = vrsqrt.pop %v728
    %v731 = vrsqrt.pop %v729
    %v732 = vmul.f32 %v718, %v730
    %v733 = vmul.f32 %v719, %v731
    %v735 = vlaneseq
    %v736 = vshrl.u32 %v735, 7
    %v737 = vsub.s32 0, %v736
    %v738 = vrot.slane %v709, %v737
    %v740 = vmul.f32 %v732, %v738
    %v741 = vmul.f32 %v733, %v738
    %v743 = vlaneseq
    %v744 = vshrl.u32 %v743, 7
    %v745 = vsub.s32 0, %v744
    %v746 = vrot.slane %v710, %v745
    %v748 = vadd.f32 %v740, %v746
    %v749 = vadd.f32 %v741, %v746
    %v750 = vpack.c.bf16 %v749, %v748
    %v751 = vld [vmem:[#allocation11] sm:$0xff]
    %v752 = vld [vmem:[#allocation11 + $0x8] sm:$0xff]
    %v753 = vld [vmem:[#allocation11 + $0x10] sm:$0xff]
    %v754 = vld [vmem:[#allocation11 + $0x18] sm:$0xff]
    %v755 = vld [vmem:[#allocation11 + $0x20] sm:$0xff]
    %v756 = vld [vmem:[#allocation11 + $0x28] sm:$0xff]
    %v757 = vld [vmem:[#allocation11 + $0x30] sm:$0xff]
    %v758 = vld [vmem:[#allocation11 + $0x38] sm:$0xff]
    %v759 = vld [vmem:[#allocation11 + $0x40] sm:$0xff]
    %v760 = vld [vmem:[#allocation11 + $0x48] sm:$0xff]
    %v761 = vld [vmem:[#allocation11 + $0x50] sm:$0xff]
    %v762 = vld [vmem:[#allocation11 + $0x58] sm:$0xff]
    %v763 = vld [vmem:[#allocation11 + $0x60] sm:$0xff]
    %v764 = vld [vmem:[#allocation11 + $0x68] sm:$0xff]
    %v765 = vld [vmem:[#allocation11 + $0x70] sm:$0xff]
    %v766 = vld [vmem:[#allocation11 + $0x78] sm:$0xff]
    %v767 = vld [vmem:[%s9] sm:$0x3]
    %v769 = vlaneseq
    %v770 = vshrl.u32 %v769, 7
    %v771 = vsub.s32 0, %v770
    %v772 = vrot.slane %v767, %v771
    %v773 = vlaneseq
    %v774 = vshrl.u32 %v773, 7
    %v775 = vsub.s32 1, %v774
    %v776 = vrot.slane %v767, %v775
    %v795 = vunpack.c.l.b16 %v751
    %v796 = vunpack.c.h.b16 %v751
    %v797 = vunpack.c.l.b16 %v752
    %v798 = vunpack.c.h.b16 %v752
    %v799 = vunpack.c.l.b16 %v753
    %v800 = vunpack.c.h.b16 %v753
    %v801 = vunpack.c.l.b16 %v754
    %v802 = vunpack.c.h.b16 %v754
    %v803 = vunpack.c.l.b16 %v755
    %v804 = vunpack.c.h.b16 %v755
    %v805 = vunpack.c.l.b16 %v756
    %v806 = vunpack.c.h.b16 %v756
    %v807 = vunpack.c.l.b16 %v757
    %v808 = vunpack.c.h.b16 %v757
    %v809 = vunpack.c.l.b16 %v758
    %v810 = vunpack.c.h.b16 %v758
    %v811 = vunpack.c.l.b16 %v759
    %v812 = vunpack.c.h.b16 %v759
    %v813 = vunpack.c.l.b16 %v760
    %v814 = vunpack.c.h.b16 %v760
    %v815 = vunpack.c.l.b16 %v761
    %v816 = vunpack.c.h.b16 %v761
    %v817 = vunpack.c.l.b16 %v762
    %v818 = vunpack.c.h.b16 %v762
    %v819 = vunpack.c.l.b16 %v763
    %v820 = vunpack.c.h.b16 %v763
    %v821 = vunpack.c.l.b16 %v764
    %v822 = vunpack.c.h.b16 %v764
    %v823 = vunpack.c.l.b16 %v765
    %v824 = vunpack.c.h.b16 %v765
    %v825 = vunpack.c.l.b16 %v766
    %v826 = vunpack.c.h.b16 %v766
    %v827 = vpack.c.b16 %v797, %v795
    %v828 = vpack.c.b16 %v798, %v796
    %v829 = vpack.c.b16 %v801, %v799
    %v830 = vpack.c.b16 %v802, %v800
    %v831 = vpack.c.b16 %v805, %v803
    %v832 = vpack.c.b16 %v806, %v804
    %v833 = vpack.c.b16 %v809, %v807
    %v834 = vpack.c.b16 %v810, %v808
    %v835 = vpack.c.b16 %v813, %v811
    %v836 = vpack.c.b16 %v814, %v812
    %v837 = vpack.c.b16 %v817, %v815
    %v838 = vpack.c.b16 %v818, %v816
    %v839 = vpack.c.b16 %v821, %v819
    %v840 = vpack.c.b16 %v822, %v820
    %v841 = vpack.c.b16 %v825, %v823
    %v842 = vpack.c.b16 %v826, %v824
    %859 = vmatprep.subr.bf16.mxu0 %v828
    %860 = vmatpush1.bf16.msra.mxu0 %v827
    %861 = vmatprep.subr.bf16.mxu0 %v830
    %862 = vmatpush1.bf16.msra.mxu0 %v829
    %863 = vmatprep.subr.bf16.mxu0 %v832
    %864 = vmatpush1.bf16.msra.mxu0 %v831
    %865 = vmatprep.subr.bf16.mxu0 %v834
    %866 = vmatpush1.bf16.msra.mxu0 %v833
    %867 = vmatprep.subr.bf16.mxu0 %v836
    %868 = vmatpush1.bf16.msra.mxu0 %v835
    %869 = vmatprep.subr.bf16.mxu0 %v838
    %870 = vmatpush1.bf16.msra.mxu0 %v837
    %871 = vmatprep.subr.bf16.mxu0 %v840
    %872 = vmatpush1.bf16.msra.mxu0 %v839
    %873 = vmatprep.subr.bf16.mxu0 %v842
    %874 = vmatpush1.bf16.msra.mxu0 %v841
    %875 = vmatprep.subr.bf16.mxu0 0
    %876 = vmatpush1.bf16.msra.mxu0 0
    %877 = vmatprep.subr.bf16.mxu0 0
    %878 = vmatpush1.bf16.msra.mxu0 0
    %879 = vmatprep.subr.bf16.mxu0 0
    %880 = vmatpush1.bf16.msra.mxu0 0
    %881 = vmatprep.subr.bf16.mxu0 0
    %882 = vmatpush1.bf16.msra.mxu0 0
    %883 = vmatprep.subr.bf16.mxu0 0
    %884 = vmatpush1.bf16.msra.mxu0 0
    %885 = vmatprep.subr.bf16.mxu0 0
    %886 = vmatpush1.bf16.msra.mxu0 0
    %887 = vmatprep.subr.bf16.mxu0 0
    %888 = vmatpush1.bf16.msra.mxu0 0
    %889 = vmatprep.subr.bf16.mxu0 0
    %890 = vmatpush1.bf16.msra.mxu0 0
    %891 = vmatprep.mubr.bf16.mxu0 0
    %892 = vmatmul.mubr.bf16.gmra.mrb[0].mxu0 %v750
    %v893 = vpop.f32.mrb[0].mxu0
    %v894 = vadd.f32 %v772, %v893
    %v895 = vpop.f32.mrb[0].mxu0
    %v896 = vadd.f32 %v776, %v895
    %v897 = vpop.f32.mrb[0].mxu0
    %v898 = vadd.f32 %v772, %v897
    %v899 = vpop.f32.mrb[0].mxu0
    %v900 = vadd.f32 %v776, %v899
    %901 = vdwg.mxu0
    %v902 = vmul.f32 %v894, %v894
    %v903 = vmul.f32 %v896, %v896
    %v904 = vmul.f32 %v898, %v898
    %v905 = vmul.f32 %v900, %v900
    %v906 = vmul.f32 %v894, %v902
    %v907 = vmul.f32 %v896, %v903
    %v908 = vmul.f32 %v898, %v904
    %v909 = vmul.f32 %v900, %v905
    %v910 = vmul.f32 %v906, 0.044715
    %v911 = vmul.f32 %v907, 0.044715
    %v912 = vmul.f32 %v908, 0.044715
    %v913 = vmul.f32 %v909, 0.044715
    %v914 = vadd.f32 %v894, %v910
    %v915 = vadd.f32 %v896, %v911
    %v916 = vadd.f32 %v898, %v912
    %v917 = vadd.f32 %v900, %v913
    %v918 = vmul.f32 %v914, 0.7978846
    %v919 = vmul.f32 %v915, 0.7978846
    %v920 = vmul.f32 %v916, 0.7978846
    %v921 = vmul.f32 %v917, 0.7978846
    %v922 = vtanh.pop %v918
    %v923 = vtanh.pop %v919
    %v924 = vtanh.pop %v920
    %v925 = vtanh.pop %v921
    %v926 = vadd.f32 %v922, 1.0
    %v927 = vadd.f32 %v923, 1.0
    %v928 = vadd.f32 %v924, 1.0
    %v929 = vadd.f32 %v925, 1.0
    %v930 = vmul.f32 %v926, 0.5
    %v931 = vmul.f32 %v927, 0.5
    %v932 = vmul.f32 %v928, 0.5
    %v933 = vmul.f32 %v929, 0.5
    %v934 = vmul.f32 %v894, %v930
    %v935 = vmul.f32 %v896, %v931
    %v936 = vmul.f32 %v898, %v932
    %v937 = vmul.f32 %v900, %v933
    %v938 = vpack.c.bf16 %v936, %v934
    %v939 = vpack.c.bf16 %v937, %v935
    %v940 = vld [vmem:[#allocation12] sm:$0xf]
    %v941 = vld [vmem:[#allocation12 + $0x4] sm:$0xf]
    %v942 = vld [vmem:[#allocation12 + $0x8] sm:$0xf]
    %v943 = vld [vmem:[#allocation12 + $0xc] sm:$0xf]
    %v944 = vld [vmem:[#allocation12 + $0x10] sm:$0xf]
    %v945 = vld [vmem:[#allocation12 + $0x14] sm:$0xf]
    %v946 = vld [vmem:[#allocation12 + $0x18] sm:$0xf]
    %v947 = vld [vmem:[#allocation12 + $0x1c] sm:$0xf]
    %v948 = vld [vmem:[#allocation12 + $0x20] sm:$0xf]
    %v949 = vld [vmem:[#allocation12 + $0x24] sm:$0xf]
    %v950 = vld [vmem:[#allocation12 + $0x28] sm:$0xf]
    %v951 = vld [vmem:[#allocation12 + $0x2c] sm:$0xf]
    %v952 = vld [vmem:[#allocation12 + $0x30] sm:$0xf]
    %v953 = vld [vmem:[#allocation12 + $0x34] sm:$0xf]
    %v954 = vld [vmem:[#allocation12 + $0x38] sm:$0xf]
    %v955 = vld [vmem:[#allocation12 + $0x3c] sm:$0xf]
    %v956 = vld [vmem:[#allocation12 + $0x40] sm:$0xf]
    %v957 = vld [vmem:[#allocation12 + $0x44] sm:$0xf]
    %v958 = vld [vmem:[#allocation12 + $0x48] sm:$0xf]
    %v959 = vld [vmem:[#allocation12 + $0x4c] sm:$0xf]
    %v960 = vld [vmem:[#allocation12 + $0x50] sm:$0xf]
    %v961 = vld [vmem:[#allocation12 + $0x54] sm:$0xf]
    %v962 = vld [vmem:[#allocation12 + $0x58] sm:$0xf]
    %v963 = vld [vmem:[#allocation12 + $0x5c] sm:$0xf]
    %v964 = vld [vmem:[#allocation12 + $0x60] sm:$0xf]
    %v965 = vld [vmem:[#allocation12 + $0x64] sm:$0xf]
    %v966 = vld [vmem:[#allocation12 + $0x68] sm:$0xf]
    %v967 = vld [vmem:[#allocation12 + $0x6c] sm:$0xf]
    %v968 = vld [vmem:[#allocation12 + $0x70] sm:$0xf]
    %v969 = vld [vmem:[#allocation12 + $0x74] sm:$0xf]
    %v970 = vld [vmem:[#allocation12 + $0x78] sm:$0xf]
    %v971 = vld [vmem:[#allocation12 + $0x7c] sm:$0xf]
    %v972 = vld [vmem:[%s11] sm:$0x1]
    %v974 = vlaneseq
    %v975 = vshrl.u32 %v974, 7
    %v976 = vsub.s32 0, %v975
    %v977 = vrot.slane %v972, %v976
    %v1011 = vunpack.c.l.b16 %v940
    %v1012 = vunpack.c.l.b16 %v941
    %v1013 = vunpack.c.l.b16 %v942
    %v1014 = vunpack.c.l.b16 %v943
    %v1015 = vunpack.c.l.b16 %v944
    %v1016 = vunpack.c.l.b16 %v945
    %v1017 = vunpack.c.l.b16 %v946
    %v1018 = vunpack.c.l.b16 %v947
    %v1019 = vunpack.c.l.b16 %v948
    %v1020 = vunpack.c.l.b16 %v949
    %v1021 = vunpack.c.l.b16 %v950
    %v1022 = vunpack.c.l.b16 %v951
    %v1023 = vunpack.c.l.b16 %v952
    %v1024 = vunpack.c.l.b16 %v953
    %v1025 = vunpack.c.l.b16 %v954
    %v1026 = vunpack.c.l.b16 %v955
    %v1027 = vunpack.c.l.b16 %v956
    %v1028 = vunpack.c.l.b16 %v957
    %v1029 = vunpack.c.l.b16 %v958
    %v1030 = vunpack.c.l.b16 %v959
    %v1031 = vunpack.c.l.b16 %v960
    %v1032 = vunpack.c.l.b16 %v961
    %v1033 = vunpack.c.l.b16 %v962
    %v1034 = vunpack.c.l.b16 %v963
    %v1035 = vunpack.c.l.b16 %v964
    %v1036 = vunpack.c.l.b16 %v965
    %v1037 = vunpack.c.l.b16 %v966
    %v1038 = vunpack.c.l.b16 %v967
    %v1039 = vunpack.c.l.b16 %v968
    %v1040 = vunpack.c.l.b16 %v969
    %v1041 = vunpack.c.l.b16 %v970
    %v1042 = vunpack.c.l.b16 %v971
    %v1043 = vpack.c.b16 %v1012, %v1011
    %v1044 = vpack.c.b16 %v1014, %v1013
    %v1045 = vpack.c.b16 %v1016, %v1015
    %v1046 = vpack.c.b16 %v1018, %v1017
    %v1047 = vpack.c.b16 %v1020, %v1019
    %v1048 = vpack.c.b16 %v1022, %v1021
    %v1049 = vpack.c.b16 %v1024, %v1023
    %v1050 = vpack.c.b16 %v1026, %v1025
    %v1051 = vpack.c.b16 %v1028, %v1027
    %v1052 = vpack.c.b16 %v1030, %v1029
    %v1053 = vpack.c.b16 %v1032, %v1031
    %v1054 = vpack.c.b16 %v1034, %v1033
    %v1055 = vpack.c.b16 %v1036, %v1035
    %v1056 = vpack.c.b16 %v1038, %v1037
    %v1057 = vpack.c.b16 %v1040, %v1039
    %v1058 = vpack.c.b16 %v1042, %v1041
    %1075 = vmatprep.subr.bf16.mxu0 0
    %1076 = vmatpush1.bf16.msra.mxu0 %v1043
    %1077 = vmatprep.subr.bf16.mxu0 0
    %1078 = vmatpush1.bf16.msra.mxu0 %v1044
    %1079 = vmatprep.subr.bf16.mxu0 0
    %1080 = vmatpush1.bf16.msra.mxu0 %v1045
    %1081 = vmatprep.subr.bf16.mxu0 0
    %1082 = vmatpush1.bf16.msra.mxu0 %v1046
    %1083 = vmatprep.subr.bf16.mxu0 0
    %1084 = vmatpush1.bf16.msra.mxu0 %v1047
    %1085 = vmatprep.subr.bf16.mxu0 0
    %1086 = vmatpush1.bf16.msra.mxu0 %v1048
    %1087 = vmatprep.subr.bf16.mxu0 0
    %1088 = vmatpush1.bf16.msra.mxu0 %v1049
    %1089 = vmatprep.subr.bf16.mxu0 0
    %1090 = vmatpush1.bf16.msra.mxu0 %v1050
    %1091 = vmatprep.subr.bf16.mxu0 0
    %1092 = vmatpush1.bf16.msra.mxu0 %v1051
    %1093 = vmatprep.subr.bf16.mxu0 0
    %1094 = vmatpush1.bf16.msra.mxu0 %v1052
    %1095 = vmatprep.subr.bf16.mxu0 0
    %1096 = vmatpush1.bf16.msra.mxu0 %v1053
    %1097 = vmatprep.subr.bf16.mxu0 0
    %1098 = vmatpush1.bf16.msra.mxu0 %v1054
    %1099 = vmatprep.subr.bf16.mxu0 0
    %1100 = vmatpush1.bf16.msra.mxu0 %v1055
    %1101 = vmatprep.subr.bf16.mxu0 0
    %1102 = vmatpush1.bf16.msra.mxu0 %v1056
    %1103 = vmatprep.subr.bf16.mxu0 0
    %1104 = vmatpush1.bf16.msra.mxu0 %v1057
    %1105 = vmatprep.subr.bf16.mxu0 0
    %1106 = vmatpush1.bf16.msra.mxu0 %v1058
    %1107 = vmatprep.mubr.bf16.mxu0 %v939
    %1108 = vmatmul.mubr.bf16.gmra.mrb[0].mxu0 %v938
    %v1109 = vpop.f32.mrb[0].mxu0
    %v1110 = vadd.f32 %v977, %v1109
    %v1111 = vpop.f32.mrb[0].mxu0
    %v1112 = vpop.f32.mrb[0].mxu0
    %v1113 = vadd.f32 %v977, %v1112
    %v1114 = vpop.f32.mrb[0].mxu0
    %1115 = vdwg.mxu0
    %v1116 = vadd.f32 %v748, %v1110
    %v1117 = vadd.f32 %v749, %v1113
    %v1118 = vld [vmem:[%s12] sm:$0x1]
    %v1119 = vld [vmem:[%s13] sm:$0x1]
    %1120 = vadd.xlane.f32.xlu0 %v1116
    %v1121 = vpop.xlane.xlu0 %1120
    %1122 = vadd.xlane.f32.xlu0 %v1117
    %v1123 = vpop.xlane.xlu0 %1122
    %v1124 = vmul.f32 %v1121, %v715
    %v1125 = vmul.f32 %v1123, %v715
    %v1126 = vsub.f32 %v1116, %v1124
    %v1127 = vsub.f32 %v1117, %v1125
    %v1128 = vmul.f32 %v1126, %v1126
    %v1129 = vmul.f32 %v1127, %v1127
    %1130 = vadd.xlane.f32.xlu0 %v1128
    %v1131 = vpop.xlane.xlu0 %1130
    %1132 = vadd.xlane.f32.xlu0 %v1129
    %v1133 = vpop.xlane.xlu0 %1132
    %v1134 = vmul.f32 %v1131, %v715
    %v1135 = vmul.f32 %v1133, %v715
    %v1136 = vadd.f32 %v1134, 1e-12
    %v1137 = vadd.f32 %v1135, 1e-12
    %v1138 = vrsqrt.pop %v1136
    %v1139 = vrsqrt.pop %v1137
    %v1140 = vmul.f32 %v1126, %v1138
    %v1141 = vmul.f32 %v1127, %v1139
    %v1143 = vlaneseq
    %v1144 = vshrl.u32 %v1143, 7
    %v1145 = vsub.s32 0, %v1144
    %v1146 = vrot.slane %v1118, %v1145
    %v1148 = vmul.f32 %v1140, %v1146
    %v1149 = vmul.f32 %v1141, %v1146
    %v1151 = vlaneseq
    %v1152 = vshrl.u32 %v1151, 7
    %v1153 = vsub.s32 0, %v1152
    %v1154 = vrot.slane %v1119, %v1153
    %v1156 = vadd.f32 %v1148, %v1154
    %v1157 = vadd.f32 %v1149, %v1154
    %v1158 = vld [vmem:[%s14] sm:$0x1]
    %s1159 = sld [smem:[#allocation2]]
    %v1160 = vstv %s1159
    %1161 = vmatprep.subr.mxu0 0.0
    %1162 = vmatpush1.xpose.msra.mxu0 %v1156
    %1163 = vmatprep.subr.mxu0 0.0
    %1164 = vmatpush1.xpose.msra.mxu0 %v1157
    %1165 = vmatprep.subr.mxu0 0.0
    %1166 = vmatpush1.xpose.msra.mxu0 0.0
    %1167 = vmatprep.subr.mxu0 0.0
    %1168 = vmatpush1.xpose.msra.mxu0 0.0
    %1169 = vmatprep.subr.mxu0 0.0
    %1170 = vmatpush1.xpose.msra.mxu0 0.0
    %1171 = vmatprep.subr.mxu0 0.0
    %1172 = vmatpush1.xpose.msra.mxu0 0.0
    %1173 = vmatprep.subr.mxu0 0.0
    %1174 = vmatpush1.xpose.msra.mxu0 0.0
    %1175 = vmatprep.subr.mxu0 0.0
    %1176 = vmatpush1.xpose.msra.mxu0 0.0
    %1177 = vmatprep.subr.mxu0 0.0
    %1178 = vmatpush1.xpose.msra.mxu0 0.0
    %1179 = vmatprep.subr.mxu0 0.0
    %1180 = vmatpush1.xpose.msra.mxu0 0.0
    %1181 = vmatprep.subr.mxu0 0.0
    %1182 = vmatpush1.xpose.msra.mxu0 0.0
    %1183 = vmatprep.subr.mxu0 0.0
    %1184 = vmatpush1.xpose.msra.mxu0 0.0
    %1185 = vmatprep.subr.mxu0 0.0
    %1186 = vmatpush1.xpose.msra.mxu0 0.0
    %1187 = vmatprep.subr.mxu0 0.0
    %1188 = vmatpush1.xpose.msra.mxu0 0.0
    %1189 = vmatprep.subr.mxu0 0.0
    %1190 = vmatpush1.xpose.msra.mxu0 0.0
    %1191 = vmatprep.subr.mxu0 0.0
    %1192 = vmatpush1.xpose.msra.mxu0 0.0
    %1193 = vmatprep.subr.mxu0 0.0
    %1194 = vmatpush1.xpose.msra.mxu0 0.0
    %1195 = vmatprep.subr.mxu0 0.0
    %1196 = vmatpush1.xpose.msra.mxu0 0.0
    %1197 = vmatprep.subr.mxu0 0.0
    %1198 = vmatpush1.xpose.msra.mxu0 0.0
    %1199 = vmatprep.subr.mxu0 0.0
    %1200 = vmatpush1.xpose.msra.mxu0 0.0
    %1201 = vmatprep.subr.mxu0 0.0
    %1202 = vmatpush1.xpose.msra.mxu0 0.0
    %1203 = vmatprep.subr.mxu0 0.0
    %1204 = vmatpush1.xpose.msra.mxu0 0.0
    %1205 = vmatprep.subr.mxu0 0.0
    %1206 = vmatpush1.xpose.msra.mxu0 0.0
    %1207 = vmatprep.subr.mxu0 0.0
    %1208 = vmatpush1.xpose.msra.mxu0 0.0
    %1209 = vmatprep.subr.mxu0 0.0
    %1210 = vmatpush1.xpose.msra.mxu0 0.0
    %1211 = vmatprep.subr.mxu0 0.0
    %1212 = vmatpush1.xpose.msra.mxu0 0.0
    %1213 = vmatprep.subr.mxu0 0.0
    %1214 = vmatpush1.xpose.msra.mxu0 0.0
    %1215 = vmatprep.subr.mxu0 0.0
    %1216 = vmatpush1.xpose.msra.mxu0 0.0
    %1217 = vmatprep.subr.mxu0 0.0
    %1218 = vmatpush1.xpose.msra.mxu0 0.0
    %1219 = vmatprep.subr.mxu0 0.0
    %1220 = vmatpush1.xpose.msra.mxu0 0.0
    %1221 = vmatprep.subr.mxu0 0.0
    %1222 = vmatpush1.xpose.msra.mxu0 0.0
    %1223 = vmatprep.subr.mxu0 0.0
    %1224 = vmatpush1.xpose.msra.mxu0 0.0
    %1225 = vmatprep.mubr.f32.mxu0 0.0
    %1226 = vmatmul.mubr.f32.gmra.mrb[0].mxu0 %v1158
    %v1227 = vpop.f32.mrb[0].mxu0
    %v1228 = vadd.f32 %v1160, %v1227
    %v1229 = vpop.f32.mrb[0].mxu0
    %1230 = vdwg.mxu0
    %v1231 = vxor.u32 %v1228, 2147483648
    %v1232 = vmul.f32 %v1231, 1.442695
    %v1233 = vpow.pop %v1232
    %v1234 = vadd.f32 %v1233, 1.0
    %v1235 = vrcp.pop %v1234
    %v1236 = vmul.f32 1.0, %v1235
    %vm1237 = vcmask 122880
    %1238 = vst.msk [vmem:[#allocation14] sm:$0x1] %vm1237, %v1236
    // Predicated region
    $region90: #{tpu_custom_call.1} parent=1 // pred_check
      _
    $region91: #{tpu_custom_call.1} parent=1 // pred_check_branch
      %1240 = sbr.rel (0) target = $region93
    $region92: #{tpu_custom_call.1} parent=1 // pred_region
      %s1242 = ssub.s32 16, 16
      %1243 = vsyncadd [#allocation5], %s1242
      %s1245 = sshll.u32 [#allocation14], 4
      %s1246 = int_to_ptr.vmem [resolvable:$true] %s1245
      %1248 = dma.vmem_to_hbm [thread:$0]  %s1246, 16, %s16, [#allocation5]
    $region93: #{tpu_custom_call.1} parent=1 // pred_fallthru
      _
    // Predicated region
    $region94: #{tpu_custom_call.1} parent=1 // pred_check
      _
    $region95: #{tpu_custom_call.1} parent=1 // pred_check_branch
      %1250 = sbr.rel (0) target = $region97
    $region96: #{tpu_custom_call.1} parent=1 // pred_region
      %1251 = dma.done [#allocation5], 16
    $region97: #{tpu_custom_call.1} parent=1 // pred_fallthru
      _
    %1252 = vsyncpa [#allocation4], 1
    %1253 = vsyncpa [#allocation7], 1
    %1254 = vsyncpa [#allocation10], 1
    %1255 = vsyncpa [#allocation13], 1
    %1256 = vsyncpa [#allocation5], 1

</llo_original>
